<compile_context>
chip_gen: v7x
topology: tpu7x:2x2x1
jax: 0.10.0
libtpu: 0.0.40
codegen_flags: <defaults>
</compile_context>

<pallas_src>
import functools

import numpy as np
import jax
import jax.numpy as jnp
from jax import lax
from jax.experimental import pallas as pl
from jax.experimental.pallas import tpu as pltpu

_LOG_E = 1.5
_SPAN = float(10.0 ** _LOG_E - 1.0)          # 10**1.5 - 1
_INV_LN10 = float(1.0 / np.log(10.0))


def _round_up(v, m):
    return ((v + m - 1) // m) * m


@functools.lru_cache(maxsize=None)
def _vmem_limit_bytes():
    """Generation-aware scoped-VMEM limit (fallback: proven-safe 32 MiB)."""
    try:
        cap = int(getattr(pltpu.get_tpu_info(), "vmem_capacity_bytes", 0))
    except Exception:
        cap = 0
    if cap <= 0:
        return 32 * 1024 * 1024
    # 3/4 of physical leaves double-buffer / compiler-scratch headroom:
    # v7x (64 MiB) -> 48 MiB, v5e/v6e (128 MiB) -> 96 MiB.
    return min((cap * 3) // 4, 96 * 1024 * 1024)


# ----------------------- small-path kernel 1: importance -----------------------
def _imp_small_kernel(x_ref, imp_ref, *, f):
    x = x_ref[...]                                            # (n, f), input dtype
    # Row sums on the MXU (no f32 upcast of the tile), accumulate in f32.
    s = jnp.dot(x, jnp.ones((f, 1), x.dtype),
                preferred_element_type=jnp.float32)           # (n, 1)
    imp_ref[...] = 1.0 / (1.0 + jnp.exp(-s * (1.0 / f)))      # sigmoid(mean)


# -------------------- small-path kernel 2: fused mask + apply ------------------
def _mask_apply_kernel(imp_col_ref, imp_row_ref, sampler_ref, x_ref, out_ref,
                       *, n, p):
    imp_col = imp_col_ref[...]                                # (n, 1)
    imp_row = imp_row_ref[...]                                # (1, n)
    row_idx = lax.broadcasted_iota(jnp.int32, (n, 1), 0)
    col_idx = lax.broadcasted_iota(jnp.int32, (1, n), 1)
    less = imp_row < imp_col                                  # imp[j] <  imp[i]
    tie = (imp_row == imp_col) & (col_idx < row_idx)          # stable tie-break
    cmp = jnp.where(less | tie, 1.0, 0.0).astype(jnp.float32)  # (n, n)
    rank = jnp.dot(cmp, jnp.ones((n, 1), jnp.float32),
                   preferred_element_type=jnp.float32)        # (n, 1) count on MXU
    scale = _SPAN / float(n - 1) if n > 1 else 0.0            # n == 1 guard
    drop = (float(p) / _LOG_E) * jnp.log(rank * scale + 1.0) * _INV_LN10
    keep = jnp.where(sampler_ref[...] < drop, 0.0, 1.0)       # (n, 1)
    out_ref[...] = x_ref[...] * keep.astype(x_ref.dtype)      # fused apply


# ---------------------- tiled-path kernel 1: importance ------------------------
def _imp_tiled_kernel(x_ref, imp_ref, acc_ref, *, f, tf, mask_tail):
    k = pl.program_id(1)

    @pl.when(k == 0)
    def _():
        acc_ref[...] = jnp.zeros_like(acc_ref)

    x = x_ref[...]                                            # (tm, tf)
    if mask_tail:                                             # only when f % tf != 0
        col = lax.broadcasted_iota(jnp.int32, x.shape, 1) + k * tf
        x = jnp.where(col < f, x, jnp.zeros_like(x))
    acc_ref[...] += jnp.dot(x, jnp.ones((x.shape[1], 1), x.dtype),
                            preferred_element_type=jnp.float32)

    @pl.when(k == pl.num_programs(1) - 1)
    def _():
        m = acc_ref[...] * (1.0 / f)
        imp_ref[...] = 1.0 / (1.0 + jnp.exp(-m))


# ------------------- tiled-path kernel 2: keep mask (lane-dense) ---------------
def _mask_kernel(imp_col_ref, imp_row_ref, sampler_ref, keep_ref, rank_acc,
                 *, n, p, ti, tc):
    i = pl.program_id(0)
    j = pl.program_id(1)

    @pl.when(j == 0)
    def _():
        rank_acc[...] = jnp.zeros_like(rank_acc)

    imp_j = imp_col_ref[...]                                  # (tc, 1)  compared rows
    imp_i = imp_row_ref[...]                                  # (1, ti)  ranked rows (lanes)
    j_idx = lax.broadcasted_iota(jnp.int32, (tc, 1), 0) + j * tc
    i_idx = lax.broadcasted_iota(jnp.int32, (1, ti), 1) + i * ti
    # Wrapper pads imp with +inf -> padded j never counts; no validity mask needed.
    less = imp_j < imp_i
    tie = (imp_j == imp_i) & (j_idx < i_idx)                  # stable tie-break
    cmp = jnp.where(less | tie, 1.0, 0.0).astype(jnp.float32)  # (tc, ti)
    rank_acc[...] += jnp.sum(cmp, axis=0, keepdims=True)      # (1, ti) sublane reduce

    @pl.when(j == pl.num_programs(1) - 1)
    def _():
        rank = rank_acc[...]
        scale = _SPAN / float(n - 1) if n > 1 else 0.0
        drop = (float(p) / _LOG_E) * jnp.log(rank * scale + 1.0) * _INV_LN10
        keep_ref[...] = jnp.where(sampler_ref[...] < drop, 0.0, 1.0)


# -------------------------- tiled-path kernel 3: apply -------------------------
def _apply_kernel(x_ref, keep_ref, out_ref):
    out_ref[...] = x_ref[...] * keep_ref[...].astype(x_ref.dtype)


# ---------------------------------- wrapper ------------------------------------
def pdropout(x, p=0.0, *, key=None, training=True, force_tiled=False):
    """Pallas implementation of Pdropout.forward for x of shape (n, f)."""
    if not 0.0 <= p <= 1.0:
        raise ValueError("Drop rate must be in range [0,1]")
    if not training:
        return x
    if key is None:
        key = jax.random.PRNGKey(0)

    n, f = x.shape
    f32 = jnp.float32
    vmem_limit = _vmem_limit_bytes()

    # TODO(synk): torch.rand's exact RNG stream is not reproducible; the per-row
    # uniform sampler is drawn with jax.random (kept as an explicit input for
    # reproducibility/testing; it could be generated in-kernel with pltpu.prng_*).
    sampler = jax.random.uniform(key, (n, 1), dtype=f32)

    x_bytes = n * f * x.dtype.itemsize
    # Fused fast path: x (double-buffered in + out) plus the (n, n) compare tile
    # must fit the generation-aware VMEM budget.
    fused_ok = (not force_tiled and n <= 2048
                and 4 * x_bytes + 8 * n * n + (2 << 20) <= vmem_limit)

    if fused_ok:
        # ---- kernel 1: per-row importance (single VMEM-resident block) ----
        imp = pl.pallas_call(
            functools.partial(_imp_small_kernel, f=f),
            out_shape=jax.ShapeDtypeStruct((n, 1), f32),
            grid=(1,),
            in_specs=[pl.BlockSpec((n, f), lambda i: (0, 0))],
            out_specs=pl.BlockSpec((n, 1), lambda i: (0, 0)),
            compiler_params=pltpu.CompilerParams(
                dimension_semantics=("arbitrary",),
                vmem_limit_bytes=vmem_limit),
        )(x)
        imp_row = imp.reshape(1, n)   # wrapper-side layout plumbing (no kernel transpose)

        # ---- kernel 2: fused rank + drop prob + Bernoulli + apply ----
        return pl.pallas_call(
            functools.partial(_mask_apply_kernel, n=n, p=float(p)),
            out_shape=jax.ShapeDtypeStruct((n, f), x.dtype),
            grid=(1,),
            in_specs=[
                pl.BlockSpec((n, 1), lambda i: (0, 0)),    # importance, column form
                pl.BlockSpec((1, n), lambda i: (0, 0)),    # importance, row form
                pl.BlockSpec((n, 1), lambda i: (0, 0)),    # uniform sampler
                pl.BlockSpec((n, f), lambda i: (0, 0)),    # x
            ],
            out_specs=pl.BlockSpec((n, f), lambda i: (0, 0)),
            compiler_params=pltpu.CompilerParams(
                dimension_semantics=("arbitrary",),
                vmem_limit_bytes=vmem_limit),
        )(imp, imp_row, sampler, x)

    # ================================ tiled path ================================
    # ---- phase 1: importance, row-blocks (parallel) x feature-blocks (arbitrary) ----
    tm = n if n <= 256 else 256                               # mult of 8 or full dim
    tf = f if f <= 2048 else 2048                             # mult of 128 or full dim
    mask_tail = (f % tf) != 0
    imp = pl.pallas_call(
        functools.partial(_imp_tiled_kernel, f=f, tf=tf, mask_tail=mask_tail),
        out_shape=jax.ShapeDtypeStruct((n, 1), f32),
        grid=(pl.cdiv(n, tm), pl.cdiv(f, tf)),
        in_specs=[pl.BlockSpec((tm, tf), lambda i, k: (i, k))],
        out_specs=pl.BlockSpec((tm, 1), lambda i, k: (i, 0)),
        scratch_shapes=[pltpu.VMEM((tm, 1), f32)],
        compiler_params=pltpu.CompilerParams(
            dimension_semantics=("parallel", "arbitrary"),
            vmem_limit_bytes=vmem_limit),
    )(x)

    # ---- phase 2: lane-dense rank + keep mask, 2-D (parallel x arbitrary) grid ----
    if n <= 512:
        n_pad = _round_up(n, 128)
        ti = tc = n_pad
    else:
        n_pad = _round_up(n, 512)
        ti = tc = 512
    pad = n_pad - n
    imp_col = jnp.pad(imp, ((0, pad), (0, 0)), constant_values=jnp.inf)  # +inf padding
    imp_row = imp_col.reshape(1, n_pad)
    sampler_row = jnp.pad(sampler, ((0, pad), (0, 0)),
                          constant_values=1.0).reshape(1, n_pad)
    keep_row = pl.pallas_call(
        functools.partial(_mask_kernel, n=n, p=float(p), ti=ti, tc=tc),
        out_shape=jax.ShapeDtypeStruct((1, n_pad), f32),
        grid=(n_pad // ti, n_pad // tc),
        in_specs=[
            pl.BlockSpec((tc, 1), lambda i, j: (j, 0)),      # imp, compared (sublanes)
            pl.BlockSpec((1, ti), lambda i, j: (0, i)),      # imp, ranked (lanes)
            pl.BlockSpec((1, ti), lambda i, j: (0, i)),      # sampler (lanes)
        ],
        out_specs=pl.BlockSpec((1, ti), lambda i, j: (0, i)),
        scratch_shapes=[pltpu.VMEM((1, ti), f32)],           # rank accumulator
        compiler_params=pltpu.CompilerParams(
            dimension_semantics=("parallel", "arbitrary"),
            vmem_limit_bytes=vmem_limit),
    )(imp_col, imp_row, sampler_row)
    keep = keep_row[:, :n].reshape(n, 1)

    # ---- phase 3: lane-dense tiled x * keep (pure bandwidth, parallel grid) ----
    # TODO(synk): a zero-scatter variant (touching only dropped rows via manual DMA
    # into an aliased/donated buffer) would halve HBM traffic; not implemented here.
    tma = n if n <= 512 else 512
    tfa = f if f <= 1024 else 1024
    out = pl.pallas_call(
        _apply_kernel,
        out_shape=jax.ShapeDtypeStruct((n, f), x.dtype),
        grid=(pl.cdiv(n, tma), pl.cdiv(f, tfa)),
        in_specs=[
            pl.BlockSpec((tma, tfa), lambda i, j: (i, j)),   # x
            pl.BlockSpec((tma, 1), lambda i, j: (i, 0)),     # keep
        ],
        out_specs=pl.BlockSpec((tma, tfa), lambda i, j: (i, j)),
        compiler_params=pltpu.CompilerParams(
            dimension_semantics=("parallel", "parallel"),
            vmem_limit_bytes=vmem_limit),
    )(x, keep)
    return out


if __name__ == "__main__":
    root = jax.random.PRNGKey(0)
    kx, kd = jax.random.split(root)

    n, f = 16, 128                       # small MIL bag: (instances, features)
    x = jax.random.normal(kx, (n, f), dtype=jnp.float32)
    p = 0.5

    out = jax.block_until_ready(pdropout(x, p=p, key=kd, training=True))
    assert out.shape == x.shape and out.dtype == x.dtype

    # Every row is either kept exactly or zeroed out entirely.
    row_kept = jnp.all(out == x, axis=1)
    row_zero = jnp.all(out == 0.0, axis=1)
    assert bool(jnp.all(row_kept | row_zero))

    # Pure-JAX reference of the per-row keep decision (same sampler stream).
    sampler = jax.random.uniform(kd, (n, 1), dtype=jnp.float32)[:, 0]
    imp_ref = jax.nn.sigmoid(jnp.mean(x, axis=1))
    rank_ref = jnp.argsort(jnp.argsort(imp_ref)).astype(jnp.float32)
    scale = (10.0 ** 1.5 - 1.0) / (n - 1)
    drop_ref = (p / 1.5) * jnp.log10(rank_ref * scale + 1.0)
    ref_keep = sampler >= drop_ref
    borderline = jnp.abs(sampler - drop_ref) < 1e-3   # tolerate log() ulp differences
    assert bool(jnp.all((row_kept == ref_keep) | borderline))

    # Exercise the large-shape tiled path at the same small size and cross-check.
    out_t = jax.block_until_ready(
        pdropout(x, p=p, key=kd, training=True, force_tiled=True))
    row_kept_t = jnp.all(out_t == x, axis=1)
    row_zero_t = jnp.all(out_t == 0.0, axis=1)
    assert bool(jnp.all(row_kept_t | row_zero_t))
    assert bool(jnp.all((row_kept_t == ref_keep) | borderline))

    # p = 0 keeps everything; eval mode is the identity.
    out_p0 = jax.block_until_ready(pdropout(x, p=0.0, key=kd, training=True))
    assert bool(jnp.all(out_p0 == x))
    out_eval = jax.block_until_ready(pdropout(x, p=0.5, key=kd, training=False))
    assert bool(jnp.all(out_eval == x))

    print("KERNEL_OK")
</pallas_src>

<mosaic_0001>
module attributes {stable_mosaic.version = 11 : i64} {
  func.func @_imp_small_kernel(%arg0: i32, %arg1: memref<16x128xf32, #tpu.memory_space<vmem>>, %arg2: memref<16x1xf32, #tpu.memory_space<vmem>>) attributes {dimension_semantics = [#tpu.dimension_semantics<arbitrary>], iteration_bounds = array<i64: 1>, scalar_prefetch = 0 : i64, scratch_operands = 0 : i64, tpu.core_type = #tpu.core_type<tc>, window_params = [{pipeline_mode = #tpu.pipeline_mode<synchronous>, transform_indices = @transform_0, window_bounds = array<i64: 16, 128>}, {pipeline_mode = #tpu.pipeline_mode<synchronous>, transform_indices = @transform_1, window_bounds = array<i64: 16, 1>}]} {
    %c0 = arith.constant 0 : index
    %c0_0 = arith.constant 0 : index
    %0 = vector.load %arg1[%c0, %c0_0] : memref<16x128xf32, #tpu.memory_space<vmem>>, vector<16x128xf32>
    %cst = arith.constant 1.000000e+00 : f32
    %1 = vector.broadcast %cst : f32 to vector<128x1xf32>
    %cst_1 = arith.constant dense<0.000000e+00> : vector<16x1xf32>
    %2 = tpu.matmul %0, %1, %cst_1 {dimension_numbers = #tpu.dot_dimension_numbers<[1], [0], [0], [1], [0, 0, 1, 1], [], []>} : vector<16x128xf32>, vector<128x1xf32>, vector<16x1xf32> -> vector<16x1xf32>
    %cst_2 = arith.constant 0.000000e+00 : f32
    %3 = vector.broadcast %cst_2 : f32 to vector<16x1xf32>
    %4 = arith.subf %3, %2 : vector<16x1xf32>
    %cst_3 = arith.constant 7.812500e-03 : f32
    %5 = vector.broadcast %cst_3 : f32 to vector<16x1xf32>
    %6 = arith.mulf %4, %5 : vector<16x1xf32>
    %7 = math.exp %6 : vector<16x1xf32>
    %cst_4 = arith.constant 1.000000e+00 : f32
    %8 = vector.broadcast %cst_4 : f32 to vector<16x1xf32>
    %9 = arith.addf %8, %7 : vector<16x1xf32>
    %cst_5 = arith.constant 1.000000e+00 : f32
    %10 = vector.broadcast %cst_5 : f32 to vector<16x1xf32>
    %11 = arith.divf %10, %9 : vector<16x1xf32>
    %c0_6 = arith.constant 0 : index
    %c0_7 = arith.constant 0 : index
    %12 = vector.load %arg2[%c0_6, %c0_7] : memref<16x1xf32, #tpu.memory_space<vmem>>, vector<16x1xf32>
    tpu.vector_store %arg2[%c0_6, %c0_7], %11 {strides = array<i32>} : memref<16x1xf32, #tpu.memory_space<vmem>>, vector<16x1xf32>,
    return
  }
  func.func @transform_0(%arg0: i32) -> (i32, i32) {
    %c0_i32 = arith.constant 0 : i32
    %c0_i32_0 = arith.constant 0 : i32
    %c0_i32_1 = arith.constant 0 : i32
    return %c0_i32, %c0_i32_0 : i32, i32
  }
  func.func @transform_1(%arg0: i32) -> (i32, i32) {
    %c0_i32 = arith.constant 0 : i32
    %c0_i32_0 = arith.constant 0 : i32
    %c0_i32_1 = arith.constant 0 : i32
    return %c0_i32, %c0_i32_0 : i32, i32
  }
}

</mosaic_0001>

<llo_original>
// kernel: tpu_custom_call.1
$region0: #{tpu_custom_call.1}
  #allocation0 [shape = 'u32[]', space=smem, size = 0x4, offset = 0x4, fixed_abs, tag = 'smem constant byte address 0x4 - core index']
  #allocation1 [shape = 'u32[144,128]{1,0:T(1,128)}', space=vmem, size = 0x12000, scoped, tag = 'internal scratch']
  %s0 = inlined_call_operand.hbm [shape: f32[16,128], index: 0, kind: input, shape index: {}]
  %s1 = inlined_call_operand.vmem [shape: f32[16,1], index: 1, kind: output, shape index: {}]
  %s2 = sld [smem:[#allocation0]]
  $region18: #{tpu_custom_call.1} parent=0
    _
  %s4 = ssub.s32 1, %s2
  %s5 = scalar_select 0, %s4, %s2
  $region1: #{tpu_custom_call.1} parent=0
    #allocation2 [shape = 'u8[8192]{0}', space=vmem, size = 0x2000, scoped, tag = 'input window, operand 0, single buffered']
    #allocation3 [shape = 's32[1]{0}', space=sflag, size = 0x4, scoped, tag = 'scoped memory for tpu_custom_call.1']
    %6 = vsyncpa [#allocation3], 0
    // Predicated region
    $region2: #{tpu_custom_call.1} parent=1 // pred_check
      _
    $region3: #{tpu_custom_call.1} parent=1 // pred_check_branch
      %8 = sbr.rel (0) target = $region5
    $region4: #{tpu_custom_call.1} parent=1 // pred_region
      %s10 = ssub.s32 256, 256
      %11 = vsyncadd [#allocation3], %s10
      %s12 = sshll.u32 [#allocation2], 4
      %s13 = int_to_ptr.vmem [resolvable:$true] %s12
      %18 = dma.hbm_to_vmem [thread:$0]  %s0, 256, %s13, [#allocation3], 128, 128, 8
    $region5: #{tpu_custom_call.1} parent=1 // pred_fallthru
      _
    // Predicated region
    $region6: #{tpu_custom_call.1} parent=1 // pred_check
      _
    $region7: #{tpu_custom_call.1} parent=1 // pred_check_branch
      %20 = sbr.rel (0) target = $region9
    $region8: #{tpu_custom_call.1} parent=1 // pred_region
      %21 = dma.done [#allocation3], 256
    $region9: #{tpu_custom_call.1} parent=1 // pred_fallthru
      _
    %v22 = vld [vmem:[#allocation2] sm:$0xff]
    %v23 = vld [vmem:[#allocation2 + $0x8] sm:$0xff]
    %24 = vmatprep.subr.mxu0 0.0
    %25 = vmatpush1.msra.mxu0 1.0
    %26 = vmatprep.subr.mxu0 0.0
    %27 = vmatpush1.msra.mxu0 1.0
    %28 = vmatprep.subr.mxu0 0.0
    %29 = vmatpush1.msra.mxu0 1.0
    %30 = vmatprep.subr.mxu0 0.0
    %31 = vmatpush1.msra.mxu0 1.0
    %32 = vmatprep.subr.mxu0 0.0
    %33 = vmatpush1.msra.mxu0 1.0
    %34 = vmatprep.subr.mxu0 0.0
    %35 = vmatpush1.msra.mxu0 1.0
    %36 = vmatprep.subr.mxu0 0.0
    %37 = vmatpush1.msra.mxu0 1.0
    %38 = vmatprep.subr.mxu0 0.0
    %39 = vmatpush1.msra.mxu0 1.0
    %40 = vmatprep.subr.mxu0 0.0
    %41 = vmatpush1.msra.mxu0 1.0
    %42 = vmatprep.subr.mxu0 0.0
    %43 = vmatpush1.msra.mxu0 1.0
    %44 = vmatprep.subr.mxu0 0.0
    %45 = vmatpush1.msra.mxu0 1.0
    %46 = vmatprep.subr.mxu0 0.0
    %47 = vmatpush1.msra.mxu0 1.0
    %48 = vmatprep.subr.mxu0 0.0
    %49 = vmatpush1.msra.mxu0 1.0
    %50 = vmatprep.subr.mxu0 0.0
    %51 = vmatpush1.msra.mxu0 1.0
    %52 = vmatprep.subr.mxu0 0.0
    %53 = vmatpush1.msra.mxu0 1.0
    %54 = vmatprep.subr.mxu0 0.0
    %55 = vmatpush1.msra.mxu0 1.0
    %56 = vmatprep.subr.mxu0 0.0
    %57 = vmatpush1.msra.mxu0 0.0
    %58 = vmatprep.subr.mxu0 0.0
    %59 = vmatpush1.msra.mxu0 0.0
    %60 = vmatprep.subr.mxu0 0.0
    %61 = vmatpush1.msra.mxu0 0.0
    %62 = vmatprep.subr.mxu0 0.0
    %63 = vmatpush1.msra.mxu0 0.0
    %64 = vmatprep.subr.mxu0 0.0
    %65 = vmatpush1.msra.mxu0 0.0
    %66 = vmatprep.subr.mxu0 0.0
    %67 = vmatpush1.msra.mxu0 0.0
    %68 = vmatprep.subr.mxu0 0.0
    %69 = vmatpush1.msra.mxu0 0.0
    %70 = vmatprep.subr.mxu0 0.0
    %71 = vmatpush1.msra.mxu0 0.0
    %72 = vmatprep.subr.mxu0 0.0
    %73 = vmatpush1.msra.mxu0 0.0
    %74 = vmatprep.subr.mxu0 0.0
    %75 = vmatpush1.msra.mxu0 0.0
    %76 = vmatprep.subr.mxu0 0.0
    %77 = vmatpush1.msra.mxu0 0.0
    %78 = vmatprep.subr.mxu0 0.0
    %79 = vmatpush1.msra.mxu0 0.0
    %80 = vmatprep.subr.mxu0 0.0
    %81 = vmatpush1.msra.mxu0 0.0
    %82 = vmatprep.subr.mxu0 0.0
    %83 = vmatpush1.msra.mxu0 0.0
    %84 = vmatprep.subr.mxu0 0.0
    %85 = vmatpush1.msra.mxu0 0.0
    %86 = vmatprep.subr.mxu0 0.0
    %87 = vmatpush1.msra.mxu0 0.0
    %88 = vmatprep.mubr.f32.mxu0 0.0
    %89 = vmatmul.mubr.f32.gmra.mrb[0].mxu0 %v22
    %v90 = vpop.f32.mrb[0].mxu0
    %v91 = vadd.f32 0.0, %v90
    %v92 = vpop.f32.mrb[0].mxu0
    %93 = vmatprep.mubr.f32.mxu0 0.0
    %94 = vmatmul.mubr.f32.gmra.mrb[0].mxu0 %v23
    %v95 = vpop.f32.mrb[0].mxu0
    %v96 = vadd.f32 0.0, %v95
    %v97 = vpop.f32.mrb[0].mxu0
    %98 = vdwg.mxu0
    %v99 = vsub.f32 0.0, %v91
    %v100 = vsub.f32 0.0, %v96
    %v101 = vmul.f32 %v99, 0.0078125
    %v102 = vmul.f32 %v100, 0.0078125
    %v103 = vmul.f32 %v101, 1.442695
    %v104 = vpow.pop %v103
    %v105 = vmul.f32 %v102, 1.442695
    %v106 = vpow.pop %v105
    %v107 = vadd.f32 %v104, 1.0
    %v108 = vadd.f32 %v106, 1.0
    %v109 = vrcp.pop %v107
    %v110 = vmul.f32 1.0, %v109
    %v111 = vrcp.pop %v108
    %v112 = vmul.f32 1.0, %v111
    %vm113 = vcmask 7168
    %114 = vst.msk [vmem:[%s1] sm:$0xff] %vm113, %v110
    %115 = vst.msk [vmem:[%s1 + $0x8] sm:$0xff] %vm113, %v112
    // Predicated region
    $region10: #{tpu_custom_call.1} parent=1 // pred_check
      _
    $region11: #{tpu_custom_call.1} parent=1 // pred_check_branch
      %117 = sbr.rel (0) target = $region13
    $region12: #{tpu_custom_call.1} parent=1 // pred_region
      _
    $region13: #{tpu_custom_call.1} parent=1 // pred_fallthru
      _
    // Predicated region
    $region14: #{tpu_custom_call.1} parent=1 // pred_check
      _
    $region15: #{tpu_custom_call.1} parent=1 // pred_check_branch
      %119 = sbr.rel (0) target = $region17
    $region16: #{tpu_custom_call.1} parent=1 // pred_region
      _
    $region17: #{tpu_custom_call.1} parent=1 // pred_fallthru
      _
    %120 = vsyncpa [#allocation3], 1

</llo_original>
